<compile_context>
chip_gen: v7x
topology: tpu7x:2x2x1
jax: 0.10.0
libtpu: 0.0.40
codegen_flags: <defaults>
</compile_context>

<pallas_src>
import functools
import math

import jax
import jax.numpy as jnp
from jax.experimental import pallas as pl
from jax.experimental.pallas import tpu as pltpu

HIDDEN = 512


def _round_up(n, m):
    return ((n + m - 1) // m) * m


def _vmem_cap_bytes():
    # 75% of physical VMEM per TensorCore; leave headroom for Mosaic internal scratch.
    try:
        return int(0.75 * pltpu.get_tpu_info().vmem_capacity_bytes)
    except Exception:
        return 48 * 1024 * 1024  # safe on v7x (64 MiB physical), conservative elsewhere.


def mlp_head_kernel(x_ref, w1_ref, b1_ref, w2_ref, b2_ref, o_ref):
    # x_ref:  (bm, D_in)  f32 batch tile; cast to compute dtype in-kernel (no wrapper HBM pass)
    # w1_ref: (D_in, H)   compute dtype, fully resident (single-buffered)
    # b1_ref: (1, H)      f32
    # w2_ref: (H, D_out)  compute dtype, fully resident (single-buffered)
    # b2_ref: (1, D_out)  f32
    # o_ref:  (bm, D_out) output tile
    x = x_ref[...].astype(w1_ref.dtype)
    h = jnp.dot(x, w1_ref[...], preferred_element_type=jnp.float32) + b1_ref[...]
    h = jnp.where(h > 0, h, 0.1 * h)  # LeakyReLU(0.1) in f32
    out = jnp.dot(h.astype(w2_ref.dtype), w2_ref[...],
                  preferred_element_type=jnp.float32) + b2_ref[...]
    o_ref[...] = out.astype(o_ref.dtype)


def mlp_head_ktiled_kernel(x_ref, w1_ref, b1_ref, w2_ref, b2_ref, o_ref, acc_ref):
    # K-tiled first matmul for large D_in.
    # grid = (batch blocks, K blocks); K is the last, "arbitrary", axis.
    # acc_ref: (bm, H) f32 accumulator, persistent across K steps.
    k = pl.program_id(1)

    @pl.when(k == 0)
    def _():
        acc_ref[...] = jnp.zeros_like(acc_ref)

    x = x_ref[...].astype(w1_ref.dtype)
    acc_ref[...] += jnp.dot(x, w1_ref[...], preferred_element_type=jnp.float32)

    @pl.when(k == pl.num_programs(1) - 1)
    def _():
        h = acc_ref[...] + b1_ref[...]
        h = jnp.where(h > 0, h, 0.1 * h)
        out = jnp.dot(h.astype(w2_ref.dtype), w2_ref[...],
                      preferred_element_type=jnp.float32) + b2_ref[...]
        o_ref[...] = out.astype(o_ref.dtype)


@functools.partial(
    jax.jit,
    static_argnames=("block_m", "k_block", "compute_dtype", "out_dtype", "use_k_tiling"))
def projection_head_forward(x, w1, b1, w2, b2, *, block_m=512, k_block=1024,
                            compute_dtype=jnp.bfloat16, out_dtype=jnp.float32,
                            use_k_tiling=None):
    """x: (B, D_in) f32. w1: (D_in, H), b1: (1, H), w2: (H, D_out), b2: (1, D_out).
    Returns (B, D_out) in out_dtype."""
    B, D_in = x.shape
    H = w1.shape[1]
    D_out = w2.shape[1]
    cbytes = jnp.dtype(compute_dtype).itemsize
    obytes = jnp.dtype(out_dtype).itemsize

    # Batch tile: multiple of 16 (bf16 sublane packing), capped at block_m; never
    # pad the batch — the last grid block is ragged and Pallas clips it.
    bm = min(block_m, _round_up(B, 16))
    # v7x has 2 TensorCores: for large batches make sure there are >=2 grid steps
    # to shard across them.
    if B >= 512 and pl.cdiv(B, bm) < 2:
        bm = max(256, _round_up(pl.cdiv(B, 2), 16))
    grid_m = pl.cdiv(B, bm)

    vmem_cap = _vmem_cap_bytes()

    # Weights/biases are cast once in the wrapper (tiny, one-off). x stays f32 in
    # HBM and is cast inside the kernel -> no extra cast/pad/slice HBM passes.
    w1c = w1.astype(compute_dtype)
    w2c = w2.astype(compute_dtype)
    b1f = b1.reshape(1, H).astype(jnp.float32)
    b2f = b2.reshape(1, D_out).astype(jnp.float32)

    # VMEM footprint of the simple (W1 fully resident) path.
    simple_bytes = (2 * bm * D_in * 4                       # x tiles (f32, double-buffered)
                    + D_in * H * cbytes                     # W1 resident
                    + H * D_out * cbytes                    # W2 resident
                    + (H + D_out) * 4                       # biases
                    + bm * D_in * cbytes                    # x cast
                    + bm * H * 4 + bm * H * cbytes          # h f32 + h cast
                    + bm * D_out * 4                        # out f32 intermediate
                    + 2 * bm * D_out * obytes)              # out tiles (double-buffered)

    if use_k_tiling is None:
        k_tiling = (simple_bytes > int(0.6 * vmem_cap)) and (D_in % k_block == 0)
    else:
        k_tiling = bool(use_k_tiling) and (D_in % k_block == 0)
        # TODO(synk): pad D_in up to a multiple of k_block if a forced K-tiled path is
        # ever needed for D_in values that k_block does not divide.

    cost = pl.CostEstimate(
        flops=2 * B * (D_in * H + H * D_out),
        transcendentals=0,
        bytes_accessed=(B * D_in * 4 + D_in * H * cbytes + H * D_out * cbytes
                        + (H + D_out) * 4 + B * D_out * obytes),
    )
    out_shape = jax.ShapeDtypeStruct((B, D_out), out_dtype)

    if not k_tiling:
        vmem_limit = int(min(max(int(1.25 * simple_bytes), 32 * 1024 * 1024), vmem_cap))
        return pl.pallas_call(
            mlp_head_kernel,
            out_shape=out_shape,
            grid_spec=pltpu.PrefetchScalarGridSpec(
                num_scalar_prefetch=0,
                grid=(grid_m,),
                in_specs=[
                    # x tile: marches over the batch (parallel, sharded across TCs).
                    pl.BlockSpec((bm, D_in), lambda i: (i, 0)),
                    # Weights / biases: constant block index -> single-buffered residents.
                    pl.BlockSpec((D_in, H), lambda i: (0, 0),
                                 pipeline_mode=pl.Buffered(1)),
                    pl.BlockSpec((1, H), lambda i: (0, 0),
                                 pipeline_mode=pl.Buffered(1)),
                    pl.BlockSpec((H, D_out), lambda i: (0, 0),
                                 pipeline_mode=pl.Buffered(1)),
                    pl.BlockSpec((1, D_out), lambda i: (0, 0),
                                 pipeline_mode=pl.Buffered(1)),
                ],
                out_specs=pl.BlockSpec((bm, D_out), lambda i: (i, 0)),
            ),
            compiler_params=pltpu.CompilerParams(
                dimension_semantics=("parallel",),
                vmem_limit_bytes=vmem_limit,
            ),
            cost_estimate=cost,
        )(x, w1c, b1f, w2c, b2f)

    # ---- K-tiled path (large D_in): tile the contraction with an f32 accumulator ----
    tk = k_block
    grid_k = D_in // tk
    ktiled_bytes = (2 * bm * tk * 4 + 2 * tk * H * cbytes
                    + H * D_out * cbytes + (H + D_out) * 4
                    + bm * tk * cbytes
                    + bm * H * 4 + bm * H * cbytes
                    + bm * D_out * 4 + 2 * bm * D_out * obytes)
    vmem_limit = int(min(max(int(1.25 * ktiled_bytes), 32 * 1024 * 1024), vmem_cap))
    return pl.pallas_call(
        mlp_head_ktiled_kernel,
        out_shape=out_shape,
        grid_spec=pltpu.PrefetchScalarGridSpec(
            num_scalar_prefetch=0,
            grid=(grid_m, grid_k),
            in_specs=[
                pl.BlockSpec((bm, tk), lambda i, k: (i, k)),
                pl.BlockSpec((tk, H), lambda i, k: (k, 0)),
                pl.BlockSpec((1, H), lambda i, k: (0, 0),
                             pipeline_mode=pl.Buffered(1)),
                pl.BlockSpec((H, D_out), lambda i, k: (0, 0),
                             pipeline_mode=pl.Buffered(1)),
                pl.BlockSpec((1, D_out), lambda i, k: (0, 0),
                             pipeline_mode=pl.Buffered(1)),
            ],
            out_specs=pl.BlockSpec((bm, D_out), lambda i, k: (i, 0)),
            scratch_shapes=[pltpu.VMEM((bm, H), jnp.float32)],
        ),
        compiler_params=pltpu.CompilerParams(
            dimension_semantics=("parallel", "arbitrary"),
            vmem_limit_bytes=vmem_limit,
        ),
        cost_estimate=cost,
    )(x, w1c, b1f, w2c, b2f)


def init_params(key, input_dim, output_dim):
    """Deterministic PyTorch-style (Kaiming-uniform) init for the two Linears."""
    k1, k2, k3, k4 = jax.random.split(key, 4)
    bound1 = 1.0 / math.sqrt(input_dim)
    bound2 = 1.0 / math.sqrt(HIDDEN)
    # Stored as (in_features, out_features) so the kernel does x @ W.
    w1 = jax.random.uniform(k1, (input_dim, HIDDEN), jnp.float32, -bound1, bound1)
    b1 = jax.random.uniform(k2, (1, HIDDEN), jnp.float32, -bound1, bound1)
    w2 = jax.random.uniform(k3, (HIDDEN, output_dim), jnp.float32, -bound2, bound2)
    b2 = jax.random.uniform(k4, (1, output_dim), jnp.float32, -bound2, bound2)
    return w1, b1, w2, b2


def _reference_bf16(x, w1, b1, w2, b2, cd=jnp.bfloat16):
    # Same bf16-input / f32-accumulate math as the kernel, in pure JAX.
    h = jnp.dot(x.astype(cd), w1.astype(cd), preferred_element_type=jnp.float32) + b1
    h = jnp.where(h > 0, h, 0.1 * h)
    return jnp.dot(h.astype(cd), w2.astype(cd), preferred_element_type=jnp.float32) + b2


if __name__ == "__main__":
    key = jax.random.PRNGKey(0)
    kx1, kp1, kx2, kp2 = jax.random.split(key, 4)

    # --- Test 1: simple fused path; batch deliberately NOT a multiple of 8/16
    #             to exercise the ragged last block (no pad / slice in the wrapper).
    batch, input_dim, output_dim = 37, 128, 256
    x = jax.random.normal(kx1, (batch, input_dim), dtype=jnp.float32)
    w1, b1, w2, b2 = init_params(kp1, input_dim, output_dim)

    out = jax.block_until_ready(projection_head_forward(x, w1, b1, w2, b2))

    ref_bf = _reference_bf16(x, w1, b1, w2, b2)
    h32 = x @ w1 + b1
    h32 = jnp.where(h32 > 0, h32, 0.1 * h32)
    ref_f32 = h32 @ w2 + b2

    assert out.shape == (batch, output_dim)
    assert jnp.allclose(out, ref_bf, atol=1e-2, rtol=1e-2), "mismatch vs bf16 reference"
    assert jnp.allclose(out, ref_f32, atol=5e-2, rtol=5e-2), "mismatch vs f32 reference"

    # --- Test 2: K-tiled path (forced with a small k_block) to validate the
    #             large-D_in / v7x-VMEM code path at small shapes.
    batch2, input_dim2 = 64, 512
    x2 = jax.random.normal(kx2, (batch2, input_dim2), dtype=jnp.float32)
    w1b, b1b, w2b, b2b = init_params(kp2, input_dim2, output_dim)

    out2 = jax.block_until_ready(
        projection_head_forward(x2, w1b, b1b, w2b, b2b,
                                k_block=128, use_k_tiling=True))
    ref2 = _reference_bf16(x2, w1b, b1b, w2b, b2b)

    assert out2.shape == (batch2, output_dim)
    assert jnp.allclose(out2, ref2, atol=1e-2, rtol=1e-2), "mismatch in K-tiled path"

    print("KERNEL_OK")
</pallas_src>

<mosaic_0001>
module attributes {stable_mosaic.version = 11 : i64} {
  func.func @mlp_head_kernel(%arg0: i32, %arg1: memref<48x128xf32, #tpu.memory_space<vmem>>, %arg2: memref<128x512xbf16, #tpu.memory_space<vmem>>, %arg3: memref<1x512xf32, #tpu.memory_space<vmem>>, %arg4: memref<512x256xbf16, #tpu.memory_space<vmem>>, %arg5: memref<1x256xf32, #tpu.memory_space<vmem>>, %arg6: memref<48x256xf32, #tpu.memory_space<vmem>>) attributes {dimension_semantics = [#tpu.dimension_semantics<parallel>], iteration_bounds = array<i64: 1>, scalar_prefetch = 0 : i64, scratch_operands = 0 : i64, tpu.core_type = #tpu.core_type<tc>, window_params = [{transform_indices = @transform_0, window_bounds = array<i64: 48, 128>}, {pipeline_mode = #tpu.pipeline_mode<synchronous>, transform_indices = @transform_1, window_bounds = array<i64: 128, 512>}, {pipeline_mode = #tpu.pipeline_mode<synchronous>, transform_indices = @transform_2, window_bounds = array<i64: 1, 512>}, {pipeline_mode = #tpu.pipeline_mode<synchronous>, transform_indices = @transform_3, window_bounds = array<i64: 512, 256>}, {pipeline_mode = #tpu.pipeline_mode<synchronous>, transform_indices = @transform_4, window_bounds = array<i64: 1, 256>}, {transform_indices = @transform_5, window_bounds = array<i64: 48, 256>}]} {
    %c0 = arith.constant 0 : index
    %c0_0 = arith.constant 0 : index
    %0 = vector.load %arg1[%c0, %c0_0] : memref<48x128xf32, #tpu.memory_space<vmem>>, vector<48x128xf32>
    %1 = arith.truncf %0 : vector<48x128xf32> to vector<48x128xbf16>
    %c0_1 = arith.constant 0 : index
    %c0_2 = arith.constant 0 : index
    %2 = vector.load %arg2[%c0_1, %c0_2] : memref<128x512xbf16, #tpu.memory_space<vmem>>, vector<128x512xbf16>
    %cst = arith.constant dense<0.000000e+00> : vector<48x512xf32>
    %3 = tpu.matmul %1, %2, %cst {dimension_numbers = #tpu.dot_dimension_numbers<[1], [0], [0], [1], [0, 0, 1, 1], [], []>} : vector<48x128xbf16>, vector<128x512xbf16>, vector<48x512xf32> -> vector<48x512xf32>
    %c0_3 = arith.constant 0 : index
    %c0_4 = arith.constant 0 : index
    %4 = vector.load %arg3[%c0_3, %c0_4] : memref<1x512xf32, #tpu.memory_space<vmem>>, vector<1x512xf32>
    %5 = vector.broadcast %4 : vector<1x512xf32> to vector<48x512xf32>
    %6 = arith.addf %3, %5 : vector<48x512xf32>
    %cst_5 = arith.constant 0.000000e+00 : f32
    %7 = vector.broadcast %cst_5 : f32 to vector<48x512xf32>
    %8 = arith.cmpf ogt, %6, %7 : vector<48x512xf32>
    %cst_6 = arith.constant 1.000000e-01 : f32
    %9 = vector.broadcast %cst_6 : f32 to vector<48x512xf32>
    %10 = arith.mulf %9, %6 : vector<48x512xf32>
    %11 = arith.select %8, %6, %10 : vector<48x512xi1>, vector<48x512xf32>
    %12 = arith.truncf %11 : vector<48x512xf32> to vector<48x512xbf16>
    %c0_7 = arith.constant 0 : index
    %c0_8 = arith.constant 0 : index
    %13 = vector.load %arg4[%c0_7, %c0_8] : memref<512x256xbf16, #tpu.memory_space<vmem>>, vector<512x256xbf16>
    %cst_9 = arith.constant dense<0.000000e+00> : vector<48x256xf32>
    %14 = tpu.matmul %12, %13, %cst_9 {dimension_numbers = #tpu.dot_dimension_numbers<[1], [0], [0], [1], [0, 0, 1, 1], [], []>} : vector<48x512xbf16>, vector<512x256xbf16>, vector<48x256xf32> -> vector<48x256xf32>
    %c0_10 = arith.constant 0 : index
    %c0_11 = arith.constant 0 : index
    %15 = vector.load %arg5[%c0_10, %c0_11] : memref<1x256xf32, #tpu.memory_space<vmem>>, vector<1x256xf32>
    %16 = vector.broadcast %15 : vector<1x256xf32> to vector<48x256xf32>
    %17 = arith.addf %14, %16 : vector<48x256xf32>
    %c0_12 = arith.constant 0 : index
    %c0_13 = arith.constant 0 : index
    %18 = vector.load %arg6[%c0_12, %c0_13] : memref<48x256xf32, #tpu.memory_space<vmem>>, vector<48x256xf32>
    tpu.vector_store %arg6[%c0_12, %c0_13], %17 {strides = array<i32>} : memref<48x256xf32, #tpu.memory_space<vmem>>, vector<48x256xf32>,
    return
  }
  func.func @transform_0(%arg0: i32) -> (i32, i32) {
    %c0_i32 = arith.constant 0 : i32
    %c0_i32_0 = arith.constant 0 : i32
    return %arg0, %c0_i32 : i32, i32
  }
  func.func @transform_1(%arg0: i32) -> (i32, i32) {
    %c0_i32 = arith.constant 0 : i32
    %c0_i32_0 = arith.constant 0 : i32
    %c0_i32_1 = arith.constant 0 : i32
    return %c0_i32, %c0_i32_0 : i32, i32
  }
  func.func @transform_2(%arg0: i32) -> (i32, i32) {
    %c0_i32 = arith.constant 0 : i32
    %c0_i32_0 = arith.constant 0 : i32
    %c0_i32_1 = arith.constant 0 : i32
    return %c0_i32, %c0_i32_0 : i32, i32
  }
  func.func @transform_3(%arg0: i32) -> (i32, i32) {
    %c0_i32 = arith.constant 0 : i32
    %c0_i32_0 = arith.constant 0 : i32
    %c0_i32_1 = arith.constant 0 : i32
    return %c0_i32, %c0_i32_0 : i32, i32
  }
  func.func @transform_4(%arg0: i32) -> (i32, i32) {
    %c0_i32 = arith.constant 0 : i32
    %c0_i32_0 = arith.constant 0 : i32
    %c0_i32_1 = arith.constant 0 : i32
    return %c0_i32, %c0_i32_0 : i32, i32
  }
  func.func @transform_5(%arg0: i32) -> (i32, i32) {
    %c0_i32 = arith.constant 0 : i32
    %c0_i32_0 = arith.constant 0 : i32
    return %arg0, %c0_i32 : i32, i32
  }
}

</mosaic_0001>

<llo_original>
// kernel: projection_head_forward.1
$region0: #{projection_head_forward.1}
  #allocation0 [shape = 'u32[]', space=smem, size = 0x4, offset = 0x4, fixed_abs, tag = 'smem constant byte address 0x4 - core index']
  #allocation1 [shape = 'u32[144,128]{1,0:T(1,128)}', space=vmem, size = 0x12000, scoped, tag = 'internal scratch']
  %s0 = inlined_call_operand.vmem [shape: f32[37,128], index: 0, kind: input, shape index: {}]
  %s1 = inlined_call_operand.vmem [shape: bf16[128,512], index: 1, kind: input, shape index: {}]
  %s2 = inlined_call_operand.vmem [shape: f32[1,512], index: 2, kind: input, shape index: {}]
  %s3 = inlined_call_operand.vmem [shape: bf16[512,256], index: 3, kind: input, shape index: {}]
  %s4 = inlined_call_operand.vmem [shape: f32[1,256], index: 4, kind: input, shape index: {}]
  %s5 = inlined_call_operand.hbm [shape: f32[37,256], index: 5, kind: output, shape index: {}]
  %s6 = sld [smem:[#allocation0]]
  $region30: #{projection_head_forward.1} parent=0
    _
  %s8 = ssub.s32 1, %s6
  %s9 = scalar_select 0, %s8, %s6
  $region1: #{projection_head_forward.1} parent=0
    #allocation2 [shape = 'u8[49152]{0}', space=vmem, size = 0xc000, scoped, tag = 'output window, operand 0, single buffered']
    #allocation3 [shape = 's32[1]{0}', space=sflag, size = 0x4, scoped, tag = 'scoped memory for projection_head_forward.1']
    %10 = vsyncpa [#allocation3], 0
    // Predicated region
    $region2: #{projection_head_forward.1} parent=1 // pred_check
      _
    $region3: #{projection_head_forward.1} parent=1 // pred_check_branch
      %12 = sbr.rel (0) target = $region5
    $region4: #{projection_head_forward.1} parent=1 // pred_region
      _
    $region5: #{projection_head_forward.1} parent=1 // pred_fallthru
      _
    // Predicated region
    $region6: #{projection_head_forward.1} parent=1 // pred_check
      _
    $region7: #{projection_head_forward.1} parent=1 // pred_check_branch
      %14 = sbr.rel (0) target = $region9
    $region8: #{projection_head_forward.1} parent=1 // pred_region
      _
    $region9: #{projection_head_forward.1} parent=1 // pred_fallthru
      _
    // Predicated region
    $region10: #{projection_head_forward.1} parent=1 // pred_check
      _
    $region11: #{projection_head_forward.1} parent=1 // pred_check_branch
      %16 = sbr.rel (0) target = $region13
    $region12: #{projection_head_forward.1} parent=1 // pred_region
      _
    $region13: #{projection_head_forward.1} parent=1 // pred_fallthru
      _
    // Predicated region
    $region14: #{projection_head_forward.1} parent=1 // pred_check
      _
    $region15: #{projection_head_forward.1} parent=1 // pred_check_branch
      %18 = sbr.rel (0) target = $region17
    $region16: #{projection_head_forward.1} parent=1 // pred_region
      _
    $region17: #{projection_head_forward.1} parent=1 // pred_fallthru
      _
    // Predicated region
    $region18: #{projection_head_forward.1} parent=1 // pred_check
      _
    $region19: #{projection_head_forward.1} parent=1 // pred_check_branch
      %20 = sbr.rel (0) target = $region21
    $region20: #{projection_head_forward.1} parent=1 // pred_region
      _
    $region21: #{projection_head_forward.1} parent=1 // pred_fallthru
      _
    %v22 = vld [vmem:[%s0] sm:$0xff]
    %v23 = vld [vmem:[%s0 + $0x8] sm:$0xff]
    %v24 = vld [vmem:[%s0 + $0x10] sm:$0xff]
    %v25 = vld [vmem:[%s0 + $0x18] sm:$0xff]
    %v26 = vld [vmem:[%s0 + $0x20] sm:$0xff]
    %v27 = vld [vmem:[%s0 + $0x28] sm:$0xff]
    %v28 = vpack.c.bf16 %v23, %v22
    %v29 = vpack.c.bf16 %v25, %v24
    %v30 = vpack.c.bf16 %v27, %v26
    %v31 = vld [vmem:[%s1] sm:$0xff]
    %v32 = vld [vmem:[%s1 + $0x8] sm:$0xff]
    %v33 = vld [vmem:[%s1 + $0x10] sm:$0xff]
    %v34 = vld [vmem:[%s1 + $0x18] sm:$0xff]
    %v35 = vld [vmem:[%s1 + $0x20] sm:$0xff]
    %v36 = vld [vmem:[%s1 + $0x28] sm:$0xff]
    %v37 = vld [vmem:[%s1 + $0x30] sm:$0xff]
    %v38 = vld [vmem:[%s1 + $0x38] sm:$0xff]
    %v39 = vld [vmem:[%s1 + $0x40] sm:$0xff]
    %v40 = vld [vmem:[%s1 + $0x48] sm:$0xff]
    %v41 = vld [vmem:[%s1 + $0x50] sm:$0xff]
    %v42 = vld [vmem:[%s1 + $0x58] sm:$0xff]
    %v43 = vld [vmem:[%s1 + $0x60] sm:$0xff]
    %v44 = vld [vmem:[%s1 + $0x68] sm:$0xff]
    %v45 = vld [vmem:[%s1 + $0x70] sm:$0xff]
    %v46 = vld [vmem:[%s1 + $0x78] sm:$0xff]
    %v47 = vld [vmem:[%s1 + $0x80] sm:$0xff]
    %v48 = vld [vmem:[%s1 + $0x88] sm:$0xff]
    %v49 = vld [vmem:[%s1 + $0x90] sm:$0xff]
    %v50 = vld [vmem:[%s1 + $0x98] sm:$0xff]
    %v51 = vld [vmem:[%s1 + $0xa0] sm:$0xff]
    %v52 = vld [vmem:[%s1 + $0xa8] sm:$0xff]
    %v53 = vld [vmem:[%s1 + $0xb0] sm:$0xff]
    %v54 = vld [vmem:[%s1 + $0xb8] sm:$0xff]
    %v55 = vld [vmem:[%s1 + $0xc0] sm:$0xff]
    %v56 = vld [vmem:[%s1 + $0xc8] sm:$0xff]
    %v57 = vld [vmem:[%s1 + $0xd0] sm:$0xff]
    %v58 = vld [vmem:[%s1 + $0xd8] sm:$0xff]
    %v59 = vld [vmem:[%s1 + $0xe0] sm:$0xff]
    %v60 = vld [vmem:[%s1 + $0xe8] sm:$0xff]
    %v61 = vld [vmem:[%s1 + $0xf0] sm:$0xff]
    %v62 = vld [vmem:[%s1 + $0xf8] sm:$0xff]
    %v63 = vld [vmem:[%s2] sm:$0xf]
    %v65 = vlaneseq
    %v66 = vshrl.u32 %v65, 7
    %v67 = vsub.s32 0, %v66
    %v68 = vrot.slane %v63, %v67
    %v69 = vlaneseq
    %v70 = vshrl.u32 %v69, 7
    %v71 = vsub.s32 1, %v70
    %v72 = vrot.slane %v63, %v71
    %v73 = vlaneseq
    %v74 = vshrl.u32 %v73, 7
    %v75 = vsub.s32 2, %v74
    %v76 = vrot.slane %v63, %v75
    %v77 = vlaneseq
    %v78 = vshrl.u32 %v77, 7
    %v79 = vsub.s32 3, %v78
    %v80 = vrot.slane %v63, %v79
    %v117 = vunpack.c.l.b16 %v31
    %v118 = vunpack.c.h.b16 %v31
    %v119 = vunpack.c.l.b16 %v32
    %v120 = vunpack.c.h.b16 %v32
    %v121 = vunpack.c.l.b16 %v33
    %v122 = vunpack.c.h.b16 %v33
    %v123 = vunpack.c.l.b16 %v34
    %v124 = vunpack.c.h.b16 %v34
    %v125 = vunpack.c.l.b16 %v35
    %v126 = vunpack.c.h.b16 %v35
    %v127 = vunpack.c.l.b16 %v36
    %v128 = vunpack.c.h.b16 %v36
    %v129 = vunpack.c.l.b16 %v37
    %v130 = vunpack.c.h.b16 %v37
    %v131 = vunpack.c.l.b16 %v38
    %v132 = vunpack.c.h.b16 %v38
    %v133 = vunpack.c.l.b16 %v39
    %v134 = vunpack.c.h.b16 %v39
    %v135 = vunpack.c.l.b16 %v40
    %v136 = vunpack.c.h.b16 %v40
    %v137 = vunpack.c.l.b16 %v41
    %v138 = vunpack.c.h.b16 %v41
    %v139 = vunpack.c.l.b16 %v42
    %v140 = vunpack.c.h.b16 %v42
    %v141 = vunpack.c.l.b16 %v43
    %v142 = vunpack.c.h.b16 %v43
    %v143 = vunpack.c.l.b16 %v44
    %v144 = vunpack.c.h.b16 %v44
    %v145 = vunpack.c.l.b16 %v45
    %v146 = vunpack.c.h.b16 %v45
    %v147 = vunpack.c.l.b16 %v46
    %v148 = vunpack.c.h.b16 %v46
    %v149 = vunpack.c.l.b16 %v47
    %v150 = vunpack.c.h.b16 %v47
    %v151 = vunpack.c.l.b16 %v48
    %v152 = vunpack.c.h.b16 %v48
    %v153 = vunpack.c.l.b16 %v49
    %v154 = vunpack.c.h.b16 %v49
    %v155 = vunpack.c.l.b16 %v50
    %v156 = vunpack.c.h.b16 %v50
    %v157 = vunpack.c.l.b16 %v51
    %v158 = vunpack.c.h.b16 %v51
    %v159 = vunpack.c.l.b16 %v52
    %v160 = vunpack.c.h.b16 %v52
    %v161 = vunpack.c.l.b16 %v53
    %v162 = vunpack.c.h.b16 %v53
    %v163 = vunpack.c.l.b16 %v54
    %v164 = vunpack.c.h.b16 %v54
    %v165 = vunpack.c.l.b16 %v55
    %v166 = vunpack.c.h.b16 %v55
    %v167 = vunpack.c.l.b16 %v56
    %v168 = vunpack.c.h.b16 %v56
    %v169 = vunpack.c.l.b16 %v57
    %v170 = vunpack.c.h.b16 %v57
    %v171 = vunpack.c.l.b16 %v58
    %v172 = vunpack.c.h.b16 %v58
    %v173 = vunpack.c.l.b16 %v59
    %v174 = vunpack.c.h.b16 %v59
    %v175 = vunpack.c.l.b16 %v60
    %v176 = vunpack.c.h.b16 %v60
    %v177 = vunpack.c.l.b16 %v61
    %v178 = vunpack.c.h.b16 %v61
    %v179 = vunpack.c.l.b16 %v62
    %v180 = vunpack.c.h.b16 %v62
    %v181 = vpack.c.b16 %v121, %v117
    %v182 = vpack.c.b16 %v122, %v118
    %v183 = vpack.c.b16 %v123, %v119
    %v184 = vpack.c.b16 %v124, %v120
    %v185 = vpack.c.b16 %v129, %v125
    %v186 = vpack.c.b16 %v130, %v126
    %v187 = vpack.c.b16 %v131, %v127
    %v188 = vpack.c.b16 %v132, %v128
    %v189 = vpack.c.b16 %v137, %v133
    %v190 = vpack.c.b16 %v138, %v134
    %v191 = vpack.c.b16 %v139, %v135
    %v192 = vpack.c.b16 %v140, %v136
    %v193 = vpack.c.b16 %v145, %v141
    %v194 = vpack.c.b16 %v146, %v142
    %v195 = vpack.c.b16 %v147, %v143
    %v196 = vpack.c.b16 %v148, %v144
    %v197 = vpack.c.b16 %v153, %v149
    %v198 = vpack.c.b16 %v154, %v150
    %v199 = vpack.c.b16 %v155, %v151
    %v200 = vpack.c.b16 %v156, %v152
    %v201 = vpack.c.b16 %v161, %v157
    %v202 = vpack.c.b16 %v162, %v158
    %v203 = vpack.c.b16 %v163, %v159
    %v204 = vpack.c.b16 %v164, %v160
    %v205 = vpack.c.b16 %v169, %v165
    %v206 = vpack.c.b16 %v170, %v166
    %v207 = vpack.c.b16 %v171, %v167
    %v208 = vpack.c.b16 %v172, %v168
    %v209 = vpack.c.b16 %v177, %v173
    %v210 = vpack.c.b16 %v178, %v174
    %v211 = vpack.c.b16 %v179, %v175
    %v212 = vpack.c.b16 %v180, %v176
    %245 = vmatprep.subr.bf16.mxu0 %v182
    %246 = vmatpush1.bf16.msra.mxu0 %v181
    %247 = vmatprep.subr.bf16.mxu0 %v186
    %248 = vmatpush1.bf16.msra.mxu0 %v185
    %249 = vmatprep.subr.bf16.mxu0 %v190
    %250 = vmatpush1.bf16.msra.mxu0 %v189
    %251 = vmatprep.subr.bf16.mxu0 %v194
    %252 = vmatpush1.bf16.msra.mxu0 %v193
    %253 = vmatprep.subr.bf16.mxu0 %v198
    %254 = vmatpush1.bf16.msra.mxu0 %v197
    %255 = vmatprep.subr.bf16.mxu0 %v202
    %256 = vmatpush1.bf16.msra.mxu0 %v201
    %257 = vmatprep.subr.bf16.mxu0 %v206
    %258 = vmatpush1.bf16.msra.mxu0 %v205
    %259 = vmatprep.subr.bf16.mxu0 %v210
    %260 = vmatpush1.bf16.msra.mxu0 %v209
    %261 = vmatprep.subr.bf16.mxu0 0
    %262 = vmatpush1.bf16.msra.mxu0 0
    %263 = vmatprep.subr.bf16.mxu0 0
    %264 = vmatpush1.bf16.msra.mxu0 0
    %265 = vmatprep.subr.bf16.mxu0 0
    %266 = vmatpush1.bf16.msra.mxu0 0
    %267 = vmatprep.subr.bf16.mxu0 0
    %268 = vmatpush1.bf16.msra.mxu0 0
    %269 = vmatprep.subr.bf16.mxu0 0
    %270 = vmatpush1.bf16.msra.mxu0 0
    %271 = vmatprep.subr.bf16.mxu0 0
    %272 = vmatpush1.bf16.msra.mxu0 0
    %273 = vmatprep.subr.bf16.mxu0 0
    %274 = vmatpush1.bf16.msra.mxu0 0
    %275 = vmatprep.subr.bf16.mxu0 0
    %276 = vmatpush1.bf16.msra.mxu0 0
    %277 = vmatprep.mubr.bf16.mxu0 0
    %278 = vmatmul.mubr.bf16.gmra.mrb[0].mxu0 %v28
    %v279 = vpop.f32.mrb[0].mxu0
    %v280 = vadd.f32 %v68, %v279
    %v281 = vpop.f32.mrb[0].mxu0
    %v282 = vadd.f32 %v72, %v281
    %v283 = vpop.f32.mrb[0].mxu0
    %v284 = vadd.f32 %v68, %v283
    %v285 = vpop.f32.mrb[0].mxu0
    %v286 = vadd.f32 %v72, %v285
    %287 = vmatprep.mubr.bf16.mxu0 0
    %288 = vmatmul.mubr.bf16.gmra.mrb[0].mxu0 %v29
    %v289 = vpop.f32.mrb[0].mxu0
    %v290 = vadd.f32 %v68, %v289
    %v291 = vpop.f32.mrb[0].mxu0
    %v292 = vadd.f32 %v72, %v291
    %v293 = vpop.f32.mrb[0].mxu0
    %v294 = vadd.f32 %v68, %v293
    %v295 = vpop.f32.mrb[0].mxu0
    %v296 = vadd.f32 %v72, %v295
    %297 = vmatprep.mubr.bf16.mxu0 0
    %298 = vmatmul.mubr.bf16.gmra.mrb[0].mxu0 %v30
    %v299 = vpop.f32.mrb[0].mxu0
    %v300 = vadd.f32 %v68, %v299
    %v301 = vpop.f32.mrb[0].mxu0
    %v302 = vadd.f32 %v72, %v301
    %v303 = vpop.f32.mrb[0].mxu0
    %v304 = vadd.f32 %v68, %v303
    %v305 = vpop.f32.mrb[0].mxu0
    %v306 = vadd.f32 %v72, %v305
    %307 = vdwg.mxu0
    %308 = vmatprep.subr.bf16.mxu0 %v184
    %309 = vmatpush1.bf16.msra.mxu0 %v183
    %310 = vmatprep.subr.bf16.mxu0 %v188
    %311 = vmatpush1.bf16.msra.mxu0 %v187
    %312 = vmatprep.subr.bf16.mxu0 %v192
    %313 = vmatpush1.bf16.msra.mxu0 %v191
    %314 = vmatprep.subr.bf16.mxu0 %v196
    %315 = vmatpush1.bf16.msra.mxu0 %v195
    %316 = vmatprep.subr.bf16.mxu0 %v200
    %317 = vmatpush1.bf16.msra.mxu0 %v199
    %318 = vmatprep.subr.bf16.mxu0 %v204
    %319 = vmatpush1.bf16.msra.mxu0 %v203
    %320 = vmatprep.subr.bf16.mxu0 %v208
    %321 = vmatpush1.bf16.msra.mxu0 %v207
    %322 = vmatprep.subr.bf16.mxu0 %v212
    %323 = vmatpush1.bf16.msra.mxu0 %v211
    %324 = vmatprep.subr.bf16.mxu0 0
    %325 = vmatpush1.bf16.msra.mxu0 0
    %326 = vmatprep.subr.bf16.mxu0 0
    %327 = vmatpush1.bf16.msra.mxu0 0
    %328 = vmatprep.subr.bf16.mxu0 0
    %329 = vmatpush1.bf16.msra.mxu0 0
    %330 = vmatprep.subr.bf16.mxu0 0
    %331 = vmatpush1.bf16.msra.mxu0 0
    %332 = vmatprep.subr.bf16.mxu0 0
    %333 = vmatpush1.bf16.msra.mxu0 0
    %334 = vmatprep.subr.bf16.mxu0 0
    %335 = vmatpush1.bf16.msra.mxu0 0
    %336 = vmatprep.subr.bf16.mxu0 0
    %337 = vmatpush1.bf16.msra.mxu0 0
    %338 = vmatprep.subr.bf16.mxu0 0
    %339 = vmatpush1.bf16.msra.mxu0 0
    %340 = vmatprep.mubr.bf16.mxu0 0
    %341 = vmatmul.mubr.bf16.gmra.mrb[0].mxu0 %v28
    %v342 = vpop.f32.mrb[0].mxu0
    %v343 = vadd.f32 %v76, %v342
    %v344 = vpop.f32.mrb[0].mxu0
    %v345 = vadd.f32 %v80, %v344
    %v346 = vpop.f32.mrb[0].mxu0
    %v347 = vadd.f32 %v76, %v346
    %v348 = vpop.f32.mrb[0].mxu0
    %v349 = vadd.f32 %v80, %v348
    %350 = vmatprep.mubr.bf16.mxu0 0
    %351 = vmatmul.mubr.bf16.gmra.mrb[0].mxu0 %v29
    %v352 = vpop.f32.mrb[0].mxu0
    %v353 = vadd.f32 %v76, %v352
    %v354 = vpop.f32.mrb[0].mxu0
    %v355 = vadd.f32 %v80, %v354
    %v356 = vpop.f32.mrb[0].mxu0
    %v357 = vadd.f32 %v76, %v356
    %v358 = vpop.f32.mrb[0].mxu0
    %v359 = vadd.f32 %v80, %v358
    %360 = vmatprep.mubr.bf16.mxu0 0
    %361 = vmatmul.mubr.bf16.gmra.mrb[0].mxu0 %v30
    %v362 = vpop.f32.mrb[0].mxu0
    %v363 = vadd.f32 %v76, %v362
    %v364 = vpop.f32.mrb[0].mxu0
    %v365 = vadd.f32 %v80, %v364
    %v366 = vpop.f32.mrb[0].mxu0
    %v367 = vadd.f32 %v76, %v366
    %v368 = vpop.f32.mrb[0].mxu0
    %v369 = vadd.f32 %v80, %v368
    %370 = vdwg.mxu0
    %vm371 = vcmp.gt.f32.partialorder %v280, 0.0
    %vm372 = vcmp.gt.f32.partialorder %v282, 0.0
    %vm373 = vcmp.gt.f32.partialorder %v343, 0.0
    %vm374 = vcmp.gt.f32.partialorder %v345, 0.0
    %vm375 = vcmp.gt.f32.partialorder %v284, 0.0
    %vm376 = vcmp.gt.f32.partialorder %v286, 0.0
    %vm377 = vcmp.gt.f32.partialorder %v347, 0.0
    %vm378 = vcmp.gt.f32.partialorder %v349, 0.0
    %vm379 = vcmp.gt.f32.partialorder %v290, 0.0
    %vm380 = vcmp.gt.f32.partialorder %v292, 0.0
    %vm381 = vcmp.gt.f32.partialorder %v353, 0.0
    %vm382 = vcmp.gt.f32.partialorder %v355, 0.0
    %vm383 = vcmp.gt.f32.partialorder %v294, 0.0
    %vm384 = vcmp.gt.f32.partialorder %v296, 0.0
    %vm385 = vcmp.gt.f32.partialorder %v357, 0.0
    %vm386 = vcmp.gt.f32.partialorder %v359, 0.0
    %vm387 = vcmp.gt.f32.partialorder %v300, 0.0
    %vm388 = vcmp.gt.f32.partialorder %v302, 0.0
    %vm389 = vcmp.gt.f32.partialorder %v363, 0.0
    %vm390 = vcmp.gt.f32.partialorder %v365, 0.0
    %vm391 = vcmp.gt.f32.partialorder %v304, 0.0
    %vm392 = vcmp.gt.f32.partialorder %v306, 0.0
    %vm393 = vcmp.gt.f32.partialorder %v367, 0.0
    %vm394 = vcmp.gt.f32.partialorder %v369, 0.0
    %v395 = vmul.f32 %v280, 0.1
    %v396 = vmul.f32 %v282, 0.1
    %v397 = vmul.f32 %v343, 0.1
    %v398 = vmul.f32 %v345, 0.1
    %v399 = vmul.f32 %v284, 0.1
    %v400 = vmul.f32 %v286, 0.1
    %v401 = vmul.f32 %v347, 0.1
    %v402 = vmul.f32 %v349, 0.1
    %v403 = vmul.f32 %v290, 0.1
    %v404 = vmul.f32 %v292, 0.1
    %v405 = vmul.f32 %v353, 0.1
    %v406 = vmul.f32 %v355, 0.1
    %v407 = vmul.f32 %v294, 0.1
    %v408 = vmul.f32 %v296, 0.1
    %v409 = vmul.f32 %v357, 0.1
    %v410 = vmul.f32 %v359, 0.1
    %v411 = vmul.f32 %v300, 0.1
    %v412 = vmul.f32 %v302, 0.1
    %v413 = vmul.f32 %v363, 0.1
    %v414 = vmul.f32 %v365, 0.1
    %v415 = vmul.f32 %v304, 0.1
    %v416 = vmul.f32 %v306, 0.1
    %v417 = vmul.f32 %v367, 0.1
    %v418 = vmul.f32 %v369, 0.1
    %v419 = vsel %vm371, %v280, %v395
    %v420 = vsel %vm372, %v282, %v396
    %v421 = vsel %vm373, %v343, %v397
    %v422 = vsel %vm374, %v345, %v398
    %v423 = vsel %vm375, %v284, %v399
    %v424 = vsel %vm376, %v286, %v400
    %v425 = vsel %vm377, %v347, %v401
    %v426 = vsel %vm378, %v349, %v402
    %v427 = vsel %vm379, %v290, %v403
    %v428 = vsel %vm380, %v292, %v404
    %v429 = vsel %vm381, %v353, %v405
    %v430 = vsel %vm382, %v355, %v406
    %v431 = vsel %vm383, %v294, %v407
    %v432 = vsel %vm384, %v296, %v408
    %v433 = vsel %vm385, %v357, %v409
    %v434 = vsel %vm386, %v359, %v410
    %v435 = vsel %vm387, %v300, %v411
    %v436 = vsel %vm388, %v302, %v412
    %v437 = vsel %vm389, %v363, %v413
    %v438 = vsel %vm390, %v365, %v414
    %v439 = vsel %vm391, %v304, %v415
    %v440 = vsel %vm392, %v306, %v416
    %v441 = vsel %vm393, %v367, %v417
    %v442 = vsel %vm394, %v369, %v418
    %v443 = vpack.c.bf16 %v423, %v419
    %v444 = vpack.c.bf16 %v424, %v420
    %v445 = vpack.c.bf16 %v425, %v421
    %v446 = vpack.c.bf16 %v426, %v422
    %v447 = vpack.c.bf16 %v431, %v427
    %v448 = vpack.c.bf16 %v432, %v428
    %v449 = vpack.c.bf16 %v433, %v429
    %v450 = vpack.c.bf16 %v434, %v430
    %v451 = vpack.c.bf16 %v439, %v435
    %v452 = vpack.c.bf16 %v440, %v436
    %v453 = vpack.c.bf16 %v441, %v437
    %v454 = vpack.c.bf16 %v442, %v438
    %v455 = vld [vmem:[%s3] sm:$0xff]
    %v456 = vld [vmem:[%s3 + $0x8] sm:$0xff]
    %v457 = vld [vmem:[%s3 + $0x10] sm:$0xff]
    %v458 = vld [vmem:[%s3 + $0x18] sm:$0xff]
    %v459 = vld [vmem:[%s3 + $0x20] sm:$0xff]
    %v460 = vld [vmem:[%s3 + $0x28] sm:$0xff]
    %v461 = vld [vmem:[%s3 + $0x30] sm:$0xff]
    %v462 = vld [vmem:[%s3 + $0x38] sm:$0xff]
    %v463 = vld [vmem:[%s3 + $0x40] sm:$0xff]
    %v464 = vld [vmem:[%s3 + $0x48] sm:$0xff]
    %v465 = vld [vmem:[%s3 + $0x50] sm:$0xff]
    %v466 = vld [vmem:[%s3 + $0x58] sm:$0xff]
    %v467 = vld [vmem:[%s3 + $0x60] sm:$0xff]
    %v468 = vld [vmem:[%s3 + $0x68] sm:$0xff]
    %v469 = vld [vmem:[%s3 + $0x70] sm:$0xff]
    %v470 = vld [vmem:[%s3 + $0x78] sm:$0xff]
    %v471 = vld [vmem:[%s3 + $0x80] sm:$0xff]
    %v472 = vld [vmem:[%s3 + $0x88] sm:$0xff]
    %v473 = vld [vmem:[%s3 + $0x90] sm:$0xff]
    %v474 = vld [vmem:[%s3 + $0x98] sm:$0xff]
    %v475 = vld [vmem:[%s3 + $0xa0] sm:$0xff]
    %v476 = vld [vmem:[%s3 + $0xa8] sm:$0xff]
    %v477 = vld [vmem:[%s3 + $0xb0] sm:$0xff]
    %v478 = vld [vmem:[%s3 + $0xb8] sm:$0xff]
    %v479 = vld [vmem:[%s3 + $0xc0] sm:$0xff]
    %v480 = vld [vmem:[%s3 + $0xc8] sm:$0xff]
    %v481 = vld [vmem:[%s3 + $0xd0] sm:$0xff]
    %v482 = vld [vmem:[%s3 + $0xd8] sm:$0xff]
    %v483 = vld [vmem:[%s3 + $0xe0] sm:$0xff]
    %v484 = vld [vmem:[%s3 + $0xe8] sm:$0xff]
    %v485 = vld [vmem:[%s3 + $0xf0] sm:$0xff]
    %v486 = vld [vmem:[%s3 + $0xf8] sm:$0xff]
    %v487 = vld [vmem:[%s3 + $0x100] sm:$0xff]
    %v488 = vld [vmem:[%s3 + $0x108] sm:$0xff]
    %v489 = vld [vmem:[%s3 + $0x110] sm:$0xff]
    %v490 = vld [vmem:[%s3 + $0x118] sm:$0xff]
    %v491 = vld [vmem:[%s3 + $0x120] sm:$0xff]
    %v492 = vld [vmem:[%s3 + $0x128] sm:$0xff]
    %v493 = vld [vmem:[%s3 + $0x130] sm:$0xff]
    %v494 = vld [vmem:[%s3 + $0x138] sm:$0xff]
    %v495 = vld [vmem:[%s3 + $0x140] sm:$0xff]
    %v496 = vld [vmem:[%s3 + $0x148] sm:$0xff]
    %v497 = vld [vmem:[%s3 + $0x150] sm:$0xff]
    %v498 = vld [vmem:[%s3 + $0x158] sm:$0xff]
    %v499 = vld [vmem:[%s3 + $0x160] sm:$0xff]
    %v500 = vld [vmem:[%s3 + $0x168] sm:$0xff]
    %v501 = vld [vmem:[%s3 + $0x170] sm:$0xff]
    %v502 = vld [vmem:[%s3 + $0x178] sm:$0xff]
    %v503 = vld [vmem:[%s3 + $0x180] sm:$0xff]
    %v504 = vld [vmem:[%s3 + $0x188] sm:$0xff]
    %v505 = vld [vmem:[%s3 + $0x190] sm:$0xff]
    %v506 = vld [vmem:[%s3 + $0x198] sm:$0xff]
    %v507 = vld [vmem:[%s3 + $0x1a0] sm:$0xff]
    %v508 = vld [vmem:[%s3 + $0x1a8] sm:$0xff]
    %v509 = vld [vmem:[%s3 + $0x1b0] sm:$0xff]
    %v510 = vld [vmem:[%s3 + $0x1b8] sm:$0xff]
    %v511 = vld [vmem:[%s3 + $0x1c0] sm:$0xff]
    %v512 = vld [vmem:[%s3 + $0x1c8] sm:$0xff]
    %v513 = vld [vmem:[%s3 + $0x1d0] sm:$0xff]
    %v514 = vld [vmem:[%s3 + $0x1d8] sm:$0xff]
    %v515 = vld [vmem:[%s3 + $0x1e0] sm:$0xff]
    %v516 = vld [vmem:[%s3 + $0x1e8] sm:$0xff]
    %v517 = vld [vmem:[%s3 + $0x1f0] sm:$0xff]
    %v518 = vld [vmem:[%s3 + $0x1f8] sm:$0xff]
    %v519 = vld [vmem:[%s4] sm:$0x3]
    %v521 = vlaneseq
    %v522 = vshrl.u32 %v521, 7
    %v523 = vsub.s32 0, %v522
    %v524 = vrot.slane %v519, %v523
    %v525 = vlaneseq
    %v526 = vshrl.u32 %v525, 7
    %v527 = vsub.s32 1, %v526
    %v528 = vrot.slane %v519, %v527
    %v595 = vunpack.c.l.b16 %v455
    %v596 = vunpack.c.h.b16 %v455
    %v597 = vunpack.c.l.b16 %v456
    %v598 = vunpack.c.h.b16 %v456
    %v599 = vunpack.c.l.b16 %v457
    %v600 = vunpack.c.h.b16 %v457
    %v601 = vunpack.c.l.b16 %v458
    %v602 = vunpack.c.h.b16 %v458
    %v603 = vunpack.c.l.b16 %v459
    %v604 = vunpack.c.h.b16 %v459
    %v605 = vunpack.c.l.b16 %v460
    %v606 = vunpack.c.h.b16 %v460
    %v607 = vunpack.c.l.b16 %v461
    %v608 = vunpack.c.h.b16 %v461
    %v609 = vunpack.c.l.b16 %v462
    %v610 = vunpack.c.h.b16 %v462
    %v611 = vunpack.c.l.b16 %v463
    %v612 = vunpack.c.h.b16 %v463
    %v613 = vunpack.c.l.b16 %v464
    %v614 = vunpack.c.h.b16 %v464
    %v615 = vunpack.c.l.b16 %v465
    %v616 = vunpack.c.h.b16 %v465
    %v617 = vunpack.c.l.b16 %v466
    %v618 = vunpack.c.h.b16 %v466
    %v619 = vunpack.c.l.b16 %v467
    %v620 = vunpack.c.h.b16 %v467
    %v621 = vunpack.c.l.b16 %v468
    %v622 = vunpack.c.h.b16 %v468
    %v623 = vunpack.c.l.b16 %v469
    %v624 = vunpack.c.h.b16 %v469
    %v625 = vunpack.c.l.b16 %v470
    %v626 = vunpack.c.h.b16 %v470
    %v627 = vunpack.c.l.b16 %v471
    %v628 = vunpack.c.h.b16 %v471
    %v629 = vunpack.c.l.b16 %v472
    %v630 = vunpack.c.h.b16 %v472
    %v631 = vunpack.c.l.b16 %v473
    %v632 = vunpack.c.h.b16 %v473
    %v633 = vunpack.c.l.b16 %v474
    %v634 = vunpack.c.h.b16 %v474
    %v635 = vunpack.c.l.b16 %v475
    %v636 = vunpack.c.h.b16 %v475
    %v637 = vunpack.c.l.b16 %v476
    %v638 = vunpack.c.h.b16 %v476
    %v639 = vunpack.c.l.b16 %v477
    %v640 = vunpack.c.h.b16 %v477
    %v641 = vunpack.c.l.b16 %v478
    %v642 = vunpack.c.h.b16 %v478
    %v643 = vunpack.c.l.b16 %v479
    %v644 = vunpack.c.h.b16 %v479
    %v645 = vunpack.c.l.b16 %v480
    %v646 = vunpack.c.h.b16 %v480
    %v647 = vunpack.c.l.b16 %v481
    %v648 = vunpack.c.h.b16 %v481
    %v649 = vunpack.c.l.b16 %v482
    %v650 = vunpack.c.h.b16 %v482
    %v651 = vunpack.c.l.b16 %v483
    %v652 = vunpack.c.h.b16 %v483
    %v653 = vunpack.c.l.b16 %v484
    %v654 = vunpack.c.h.b16 %v484
    %v655 = vunpack.c.l.b16 %v485
    %v656 = vunpack.c.h.b16 %v485
    %v657 = vunpack.c.l.b16 %v486
    %v658 = vunpack.c.h.b16 %v486
    %v659 = vunpack.c.l.b16 %v487
    %v660 = vunpack.c.h.b16 %v487
    %v661 = vunpack.c.l.b16 %v488
    %v662 = vunpack.c.h.b16 %v488
    %v663 = vunpack.c.l.b16 %v489
    %v664 = vunpack.c.h.b16 %v489
    %v665 = vunpack.c.l.b16 %v490
    %v666 = vunpack.c.h.b16 %v490
    %v667 = vunpack.c.l.b16 %v491
    %v668 = vunpack.c.h.b16 %v491
    %v669 = vunpack.c.l.b16 %v492
    %v670 = vunpack.c.h.b16 %v492
    %v671 = vunpack.c.l.b16 %v493
    %v672 = vunpack.c.h.b16 %v493
    %v673 = vunpack.c.l.b16 %v494
    %v674 = vunpack.c.h.b16 %v494
    %v675 = vunpack.c.l.b16 %v495
    %v676 = vunpack.c.h.b16 %v495
    %v677 = vunpack.c.l.b16 %v496
    %v678 = vunpack.c.h.b16 %v496
    %v679 = vunpack.c.l.b16 %v497
    %v680 = vunpack.c.h.b16 %v497
    %v681 = vunpack.c.l.b16 %v498
    %v682 = vunpack.c.h.b16 %v498
    %v683 = vunpack.c.l.b16 %v499
    %v684 = vunpack.c.h.b16 %v499
    %v685 = vunpack.c.l.b16 %v500
    %v686 = vunpack.c.h.b16 %v500
    %v687 = vunpack.c.l.b16 %v501
    %v688 = vunpack.c.h.b16 %v501
    %v689 = vunpack.c.l.b16 %v502
    %v690 = vunpack.c.h.b16 %v502
    %v691 = vunpack.c.l.b16 %v503
    %v692 = vunpack.c.h.b16 %v503
    %v693 = vunpack.c.l.b16 %v504
    %v694 = vunpack.c.h.b16 %v504
    %v695 = vunpack.c.l.b16 %v505
    %v696 = vunpack.c.h.b16 %v505
    %v697 = vunpack.c.l.b16 %v506
    %v698 = vunpack.c.h.b16 %v506
    %v699 = vunpack.c.l.b16 %v507
    %v700 = vunpack.c.h.b16 %v507
    %v701 = vunpack.c.l.b16 %v508
    %v702 = vunpack.c.h.b16 %v508
    %v703 = vunpack.c.l.b16 %v509
    %v704 = vunpack.c.h.b16 %v509
    %v705 = vunpack.c.l.b16 %v510
    %v706 = vunpack.c.h.b16 %v510
    %v707 = vunpack.c.l.b16 %v511
    %v708 = vunpack.c.h.b16 %v511
    %v709 = vunpack.c.l.b16 %v512
    %v710 = vunpack.c.h.b16 %v512
    %v711 = vunpack.c.l.b16 %v513
    %v712 = vunpack.c.h.b16 %v513
    %v713 = vunpack.c.l.b16 %v514
    %v714 = vunpack.c.h.b16 %v514
    %v715 = vunpack.c.l.b16 %v515
    %v716 = vunpack.c.h.b16 %v515
    %v717 = vunpack.c.l.b16 %v516
    %v718 = vunpack.c.h.b16 %v516
    %v719 = vunpack.c.l.b16 %v517
    %v720 = vunpack.c.h.b16 %v517
    %v721 = vunpack.c.l.b16 %v518
    %v722 = vunpack.c.h.b16 %v518
    %v723 = vpack.c.b16 %v597, %v595
    %v724 = vpack.c.b16 %v598, %v596
    %v725 = vpack.c.b16 %v601, %v599
    %v726 = vpack.c.b16 %v602, %v600
    %v727 = vpack.c.b16 %v605, %v603
    %v728 = vpack.c.b16 %v606, %v604
    %v729 = vpack.c.b16 %v609, %v607
    %v730 = vpack.c.b16 %v610, %v608
    %v731 = vpack.c.b16 %v613, %v611
    %v732 = vpack.c.b16 %v614, %v612
    %v733 = vpack.c.b16 %v617, %v615
    %v734 = vpack.c.b16 %v618, %v616
    %v735 = vpack.c.b16 %v621, %v619
    %v736 = vpack.c.b16 %v622, %v620
    %v737 = vpack.c.b16 %v625, %v623
    %v738 = vpack.c.b16 %v626, %v624
    %v739 = vpack.c.b16 %v629, %v627
    %v740 = vpack.c.b16 %v630, %v628
    %v741 = vpack.c.b16 %v633, %v631
    %v742 = vpack.c.b16 %v634, %v632
    %v743 = vpack.c.b16 %v637, %v635
    %v744 = vpack.c.b16 %v638, %v636
    %v745 = vpack.c.b16 %v641, %v639
    %v746 = vpack.c.b16 %v642, %v640
    %v747 = vpack.c.b16 %v645, %v643
    %v748 = vpack.c.b16 %v646, %v644
    %v749 = vpack.c.b16 %v649, %v647
    %v750 = vpack.c.b16 %v650, %v648
    %v751 = vpack.c.b16 %v653, %v651
    %v752 = vpack.c.b16 %v654, %v652
    %v753 = vpack.c.b16 %v657, %v655
    %v754 = vpack.c.b16 %v658, %v656
    %v755 = vpack.c.b16 %v661, %v659
    %v756 = vpack.c.b16 %v662, %v660
    %v757 = vpack.c.b16 %v665, %v663
    %v758 = vpack.c.b16 %v666, %v664
    %v759 = vpack.c.b16 %v669, %v667
    %v760 = vpack.c.b16 %v670, %v668
    %v761 = vpack.c.b16 %v673, %v671
    %v762 = vpack.c.b16 %v674, %v672
    %v763 = vpack.c.b16 %v677, %v675
    %v764 = vpack.c.b16 %v678, %v676
    %v765 = vpack.c.b16 %v681, %v679
    %v766 = vpack.c.b16 %v682, %v680
    %v767 = vpack.c.b16 %v685, %v683
    %v768 = vpack.c.b16 %v686, %v684
    %v769 = vpack.c.b16 %v689, %v687
    %v770 = vpack.c.b16 %v690, %v688
    %v771 = vpack.c.b16 %v693, %v691
    %v772 = vpack.c.b16 %v694, %v692
    %v773 = vpack.c.b16 %v697, %v695
    %v774 = vpack.c.b16 %v698, %v696
    %v775 = vpack.c.b16 %v701, %v699
    %v776 = vpack.c.b16 %v702, %v700
    %v777 = vpack.c.b16 %v705, %v703
    %v778 = vpack.c.b16 %v706, %v704
    %v779 = vpack.c.b16 %v709, %v707
    %v780 = vpack.c.b16 %v710, %v708
    %v781 = vpack.c.b16 %v713, %v711
    %v782 = vpack.c.b16 %v714, %v712
    %v783 = vpack.c.b16 %v717, %v715
    %v784 = vpack.c.b16 %v718, %v716
    %v785 = vpack.c.b16 %v721, %v719
    %v786 = vpack.c.b16 %v722, %v720
    %851 = vmatprep.subr.bf16.mxu0 %v724
    %852 = vmatpush1.bf16.msra.mxu0 %v723
    %853 = vmatprep.subr.bf16.mxu0 %v726
    %854 = vmatpush1.bf16.msra.mxu0 %v725
    %855 = vmatprep.subr.bf16.mxu0 %v728
    %856 = vmatpush1.bf16.msra.mxu0 %v727
    %857 = vmatprep.subr.bf16.mxu0 %v730
    %858 = vmatpush1.bf16.msra.mxu0 %v729
    %859 = vmatprep.subr.bf16.mxu0 %v732
    %860 = vmatpush1.bf16.msra.mxu0 %v731
    %861 = vmatprep.subr.bf16.mxu0 %v734
    %862 = vmatpush1.bf16.msra.mxu0 %v733
    %863 = vmatprep.subr.bf16.mxu0 %v736
    %864 = vmatpush1.bf16.msra.mxu0 %v735
    %865 = vmatprep.subr.bf16.mxu0 %v738
    %866 = vmatpush1.bf16.msra.mxu0 %v737
    %867 = vmatprep.subr.bf16.mxu0 %v740
    %868 = vmatpush1.bf16.msra.mxu0 %v739
    %869 = vmatprep.subr.bf16.mxu0 %v742
    %870 = vmatpush1.bf16.msra.mxu0 %v741
    %871 = vmatprep.subr.bf16.mxu0 %v744
    %872 = vmatpush1.bf16.msra.mxu0 %v743
    %873 = vmatprep.subr.bf16.mxu0 %v746
    %874 = vmatpush1.bf16.msra.mxu0 %v745
    %875 = vmatprep.subr.bf16.mxu0 %v748
    %876 = vmatpush1.bf16.msra.mxu0 %v747
    %877 = vmatprep.subr.bf16.mxu0 %v750
    %878 = vmatpush1.bf16.msra.mxu0 %v749
    %879 = vmatprep.subr.bf16.mxu0 %v752
    %880 = vmatpush1.bf16.msra.mxu0 %v751
    %881 = vmatprep.subr.bf16.mxu0 %v754
    %882 = vmatpush1.bf16.msra.mxu0 %v753
    %883 = vmatprep.mubr.bf16.mxu0 %v444
    %884 = vmatmul.mubr.bf16.gmra.mrb[0].mxu0 %v443
    %v885 = vpop.f32.mrb[0].mxu0
    %v886 = vadd.f32 %v524, %v885
    %v887 = vpop.f32.mrb[0].mxu0
    %v888 = vadd.f32 %v528, %v887
    %v889 = vpop.f32.mrb[0].mxu0
    %v890 = vadd.f32 %v524, %v889
    %v891 = vpop.f32.mrb[0].mxu0
    %v892 = vadd.f32 %v528, %v891
    %893 = vmatprep.mubr.bf16.mxu0 %v448
    %894 = vmatmul.mubr.bf16.gmra.mrb[0].mxu0 %v447
    %v895 = vpop.f32.mrb[0].mxu0
    %v896 = vadd.f32 %v524, %v895
    %v897 = vpop.f32.mrb[0].mxu0
    %v898 = vadd.f32 %v528, %v897
    %v899 = vpop.f32.mrb[0].mxu0
    %v900 = vadd.f32 %v524, %v899
    %v901 = vpop.f32.mrb[0].mxu0
    %v902 = vadd.f32 %v528, %v901
    %903 = vmatprep.mubr.bf16.mxu0 %v452
    %904 = vmatmul.mubr.bf16.gmra.mrb[0].mxu0 %v451
    %v905 = vpop.f32.mrb[0].mxu0
    %v906 = vadd.f32 %v524, %v905
    %v907 = vpop.f32.mrb[0].mxu0
    %v908 = vadd.f32 %v528, %v907
    %v909 = vpop.f32.mrb[0].mxu0
    %v910 = vadd.f32 %v524, %v909
    %v911 = vpop.f32.mrb[0].mxu0
    %v912 = vadd.f32 %v528, %v911
    %913 = vdwg.mxu0
    %914 = vmatprep.subr.bf16.mxu0 %v756
    %915 = vmatpush1.bf16.msra.mxu0 %v755
    %916 = vmatprep.subr.bf16.mxu0 %v758
    %917 = vmatpush1.bf16.msra.mxu0 %v757
    %918 = vmatprep.subr.bf16.mxu0 %v760
    %919 = vmatpush1.bf16.msra.mxu0 %v759
    %920 = vmatprep.subr.bf16.mxu0 %v762
    %921 = vmatpush1.bf16.msra.mxu0 %v761
    %922 = vmatprep.subr.bf16.mxu0 %v764
    %923 = vmatpush1.bf16.msra.mxu0 %v763
    %924 = vmatprep.subr.bf16.mxu0 %v766
    %925 = vmatpush1.bf16.msra.mxu0 %v765
    %926 = vmatprep.subr.bf16.mxu0 %v768
    %927 = vmatpush1.bf16.msra.mxu0 %v767
    %928 = vmatprep.subr.bf16.mxu0 %v770
    %929 = vmatpush1.bf16.msra.mxu0 %v769
    %930 = vmatprep.subr.bf16.mxu0 %v772
    %931 = vmatpush1.bf16.msra.mxu0 %v771
    %932 = vmatprep.subr.bf16.mxu0 %v774
    %933 = vmatpush1.bf16.msra.mxu0 %v773
    %934 = vmatprep.subr.bf16.mxu0 %v776
    %935 = vmatpush1.bf16.msra.mxu0 %v775
    %936 = vmatprep.subr.bf16.mxu0 %v778
    %937 = vmatpush1.bf16.msra.mxu0 %v777
    %938 = vmatprep.subr.bf16.mxu0 %v780
    %939 = vmatpush1.bf16.msra.mxu0 %v779
    %940 = vmatprep.subr.bf16.mxu0 %v782
    %941 = vmatpush1.bf16.msra.mxu0 %v781
    %942 = vmatprep.subr.bf16.mxu0 %v784
    %943 = vmatpush1.bf16.msra.mxu0 %v783
    %944 = vmatprep.subr.bf16.mxu0 %v786
    %945 = vmatpush1.bf16.msra.mxu0 %v785
    %946 = vmatprep.mubr.bf16.mxu0 %v446
    %947 = vmatmul.mubr.bf16.gmra.mrb[0].mxu0 %v445
    %v948 = vpop.f32.mrb[0].mxu0
    %v949 = vadd.f32 %v886, %v948
    %v950 = vpop.f32.mrb[0].mxu0
    %v951 = vadd.f32 %v888, %v950
    %v952 = vpop.f32.mrb[0].mxu0
    %v953 = vadd.f32 %v890, %v952
    %v954 = vpop.f32.mrb[0].mxu0
    %v955 = vadd.f32 %v892, %v954
    %956 = vmatprep.mubr.bf16.mxu0 %v450
    %957 = vmatmul.mubr.bf16.gmra.mrb[0].mxu0 %v449
    %v958 = vpop.f32.mrb[0].mxu0
    %v959 = vadd.f32 %v896, %v958
    %v960 = vpop.f32.mrb[0].mxu0
    %v961 = vadd.f32 %v898, %v960
    %v962 = vpop.f32.mrb[0].mxu0
    %v963 = vadd.f32 %v900, %v962
    %v964 = vpop.f32.mrb[0].mxu0
    %v965 = vadd.f32 %v902, %v964
    %966 = vmatprep.mubr.bf16.mxu0 %v454
    %967 = vmatmul.mubr.bf16.gmra.mrb[0].mxu0 %v453
    %v968 = vpop.f32.mrb[0].mxu0
    %v969 = vadd.f32 %v906, %v968
    %v970 = vpop.f32.mrb[0].mxu0
    %v971 = vadd.f32 %v908, %v970
    %v972 = vpop.f32.mrb[0].mxu0
    %v973 = vadd.f32 %v910, %v972
    %v974 = vpop.f32.mrb[0].mxu0
    %v975 = vadd.f32 %v912, %v974
    %976 = vdwg.mxu0
    %977 = vst [vmem:[#allocation2] sm:$0xff] %v949
    %978 = vst [vmem:[#allocation2 + $0x8] sm:$0xff] %v951
    %979 = vst [vmem:[#allocation2 + $0x10] sm:$0xff] %v953
    %980 = vst [vmem:[#allocation2 + $0x18] sm:$0xff] %v955
    %981 = vst [vmem:[#allocation2 + $0x20] sm:$0xff] %v959
    %982 = vst [vmem:[#allocation2 + $0x28] sm:$0xff] %v961
    %983 = vst [vmem:[#allocation2 + $0x30] sm:$0xff] %v963
    %984 = vst [vmem:[#allocation2 + $0x38] sm:$0xff] %v965
    %985 = vst [vmem:[#allocation2 + $0x40] sm:$0xff] %v969
    %986 = vst [vmem:[#allocation2 + $0x48] sm:$0xff] %v971
    %987 = vst [vmem:[#allocation2 + $0x50] sm:$0xff] %v973
    %988 = vst [vmem:[#allocation2 + $0x58] sm:$0xff] %v975
    // Predicated region
    $region22: #{projection_head_forward.1} parent=1 // pred_check
      _
    $region23: #{projection_head_forward.1} parent=1 // pred_check_branch
      %990 = sbr.rel (0) target = $region25
    $region24: #{projection_head_forward.1} parent=1 // pred_region
      %s992 = ssub.s32 1536, 1280
      %993 = vsyncadd [#allocation3], %s992
      %s994 = sshll.u32 [#allocation2], 4
      %s995 = int_to_ptr.vmem [resolvable:$true] %s994
      %1000 = dma.vmem_to_hbm [thread:$0]  %s995, 1280, %s5, [#allocation3], 256, 256, 16
    $region25: #{projection_head_forward.1} parent=1 // pred_fallthru
      _
    // Predicated region
    $region26: #{projection_head_forward.1} parent=1 // pred_check
      _
    $region27: #{projection_head_forward.1} parent=1 // pred_check_branch
      %1002 = sbr.rel (0) target = $region29
    $region28: #{projection_head_forward.1} parent=1 // pred_region
      %1003 = dma.done [#allocation3], 1536
    $region29: #{projection_head_forward.1} parent=1 // pred_fallthru
      _
    %1004 = vsyncpa [#allocation3], 1

</llo_original>
